<compile_context>
chip_gen: v6e
topology: v6e:2x2x1
jax: 0.10.0
libtpu: 0.0.40
codegen_flags: <defaults>
</compile_context>

<pallas_src>
import functools

import jax
import jax.numpy as jnp
from jax import lax
from jax.experimental import pallas as pl
from jax.experimental.pallas import tpu as pltpu


def _roll_prev(a, axis):
    """result[..., k, ...] = a[..., k-1, ...] (wrapping)."""
    n = a.shape[axis]
    if n <= 1:
        return a
    return pltpu.roll(a, shift=1, axis=axis)


def _roll_next(a, axis):
    """result[..., k, ...] = a[..., k+1, ...] (wrapping)."""
    n = a.shape[axis]
    if n <= 1:
        return a
    return pltpu.roll(a, shift=n - 1, axis=axis)


def _sobel_tile(x, top_row, bot_row):
    """|Sobel-x| + |Sobel-y| of one (bn, ht, w) f32 tile.

    top_row / bot_row: (bn, 1, w) rows just above / below the tile (already
    zeroed where the tile touches the image border), or None meaning zero
    (i.e. the tile spans the whole image height).
    """
    bn, ht, w = x.shape
    lane, subl = 2, 1

    # Lane-axis (column) boundary masks, built once and reused for both shifts.
    col = lax.broadcasted_iota(jnp.int32, x.shape, lane)
    at_left = col == 0
    at_right = col == (w - 1)

    def hpair(a):
        """Horizontal passes: (a[j+1] - a[j-1], a[j-1] + 2*a[j] + a[j+1])."""
        if a is None:
            return None, None
        if a.shape == x.shape:
            l, r = at_left, at_right
        else:
            c = lax.broadcasted_iota(jnp.int32, a.shape, a.ndim - 1)
            l, r = c == 0, c == (a.shape[-1] - 1)
        z = jnp.zeros_like(a)
        a_jm1 = jnp.where(l, z, _roll_prev(a, a.ndim - 1))   # a[..., j-1], 0 at j==0
        a_jp1 = jnp.where(r, z, _roll_next(a, a.ndim - 1))   # a[..., j+1], 0 at j==w-1
        return a_jp1 - a_jm1, (a_jm1 + a_jp1) + (a + a)

    # Sobel-x = [1,2,1]^T (x) [-1,0,1] ; Sobel-y = [1,0,-1]^T (x) [1,2,1]
    hdiff, hsmth = hpair(x)
    top_hd, top_hs = hpair(top_row)
    bot_hd, bot_hs = hpair(bot_row)

    # Sublane-axis (row) boundary masks.
    row = lax.broadcasted_iota(jnp.int32, x.shape, subl)
    at_top = row == 0
    at_bot = row == (ht - 1)

    def vprev(a, halo):   # a[..., i-1, :]; row 0 filled from halo (or zero)
        fill = jnp.zeros_like(a) if halo is None else halo
        return jnp.where(at_top, fill, _roll_prev(a, subl))

    def vnext(a, halo):   # a[..., i+1, :]; row ht-1 filled from halo (or zero)
        fill = jnp.zeros_like(a) if halo is None else halo
        return jnp.where(at_bot, fill, _roll_next(a, subl))

    sx = vprev(hdiff, top_hd) + (hdiff + hdiff) + vnext(hdiff, bot_hd)
    out = jnp.abs(sx)
    sy = vprev(hsmth, top_hs) - vnext(hsmth, bot_hs)
    return out + jnp.abs(sy)


def _sobelxy_kernel_full(x_ref, o_ref):
    """Whole-image blocks: the zero conv padding is synthesized in-kernel."""
    x = x_ref[...].astype(jnp.float32)
    o_ref[...] = _sobel_tile(x, None, None).astype(o_ref.dtype)


def _sobelxy_kernel_htiled(x_ref, top_ref, bot_ref, o_ref, *,
                           h_total, h_tile, n_h_tiles):
    """H-tiled blocks: halo rows come from 8-row halo blocks of the same input."""
    hb = pl.program_id(1)
    x = x_ref[...].astype(jnp.float32)

    # Mask rows past the bottom of the image in the (ragged) last H tile.
    if h_total % h_tile != 0:
        row = lax.broadcasted_iota(jnp.int32, x.shape, 1) + hb * h_tile
        x = jnp.where(row < h_total, x, jnp.zeros_like(x))

    # Row just above / below this tile; zero at the image borders to match
    # F.conv2d(padding=1) zero padding.
    top = top_ref[:, 7:8, :].astype(jnp.float32)   # global row hb*h_tile - 1
    bot = bot_ref[:, 0:1, :].astype(jnp.float32)   # global row (hb+1)*h_tile
    top = top * (hb > 0).astype(top.dtype)
    bot = bot * (hb < n_h_tiles - 1).astype(bot.dtype)

    o_ref[...] = _sobel_tile(x, top, bot).astype(o_ref.dtype)


def _vmem_limit_bytes():
    """~75% of per-core VMEM: ~48 MiB on v7x, ~96 MiB on v5e/v6e."""
    cap = None
    try:
        cap = int(pltpu.get_tpu_info().vmem_capacity_bytes)
    except Exception:
        cap = None
    if not cap:
        try:
            kind = jax.devices()[0].device_kind.lower()
        except Exception:
            kind = ""
        cap = (128 << 20) if ("v5" in kind or "v6" in kind) else (64 << 20)
    return (cap * 3) // 4


@functools.partial(jax.jit, static_argnames=("block_n", "h_tile"))
def sobelxy(x, block_n=None, h_tile=None):
    """x: (N, 1, H, W). Returns |conv2d(x, Sx, pad=1)| + |conv2d(x, Sy, pad=1)|."""
    N, C, H, W = x.shape
    if C != 1:
        raise ValueError("Sobelxy has (1,1,3,3) fixed weights; input must have C == 1")

    x3 = x.reshape(N, H, W)            # squeeze the singleton channel dim
    vmem_limit = _vmem_limit_bytes()

    # Per-block f32 tile budget: 2x in + 2x out (double buffers) plus the
    # in-kernel intermediates all scale with the tile, so keep one tile at
    # roughly 1/16 of the VMEM limit (~3 MiB on v7x, ~6 MiB on v5e/v6e).
    tile_elems = max((vmem_limit // 16) // 4, 8 * 128)
    img_elems = H * W

    # Decide whether the image rows need tiling (only for large images).
    use_h_tiling = False
    if h_tile is not None:
        h_tile = int(h_tile)
        use_h_tiling = (8 <= h_tile < H) and (H % 8 == 0) and (h_tile % 8 == 0)
    elif img_elems > tile_elems and H % 8 == 0 and H >= 16:
        h_tile = min(H - 8, max(8, (tile_elems // max(W, 1)) // 8 * 8))
        use_h_tiling = True
    # TODO(synk): images with H % 8 != 0 that exceed the tile budget fall back
    # to whole-image blocks and may exceed the VMEM limit.

    if not use_h_tiling:
        if block_n is None:
            bn = max(1, tile_elems // max(img_elems, 1))
            if N >= 2:
                bn = min(bn, (N + 1) // 2)   # >= 2 grid steps -> both v7x TCs stream
            bn = min(bn, N)
        else:
            bn = max(1, min(int(block_n), N))

        out3 = pl.pallas_call(
            _sobelxy_kernel_full,
            out_shape=jax.ShapeDtypeStruct((N, H, W), x.dtype),
            grid=(pl.cdiv(N, bn),),
            in_specs=[pl.BlockSpec((bn, H, W), lambda n: (n, 0, 0))],
            out_specs=pl.BlockSpec((bn, H, W), lambda n: (n, 0, 0)),
            compiler_params=pltpu.CompilerParams(
                dimension_semantics=("parallel",),
                vmem_limit_bytes=vmem_limit,
            ),
        )(x3)
    else:
        bn = 1 if block_n is None else max(1, min(int(block_n), N))
        n_h = pl.cdiv(H, h_tile)
        ht8 = h_tile // 8          # h_tile in units of 8-row halo blocks
        nh8 = H // 8               # number of 8-row halo blocks along H

        kernel = functools.partial(_sobelxy_kernel_htiled,
                                   h_total=H, h_tile=h_tile, n_h_tiles=n_h)
        out3 = pl.pallas_call(
            kernel,
            out_shape=jax.ShapeDtypeStruct((N, H, W), x.dtype),
            grid=(pl.cdiv(N, bn), n_h),
            in_specs=[
                # main tile
                pl.BlockSpec((bn, h_tile, W), lambda n, h: (n, h, 0)),
                # 8-row block ending just above the tile (clamped; zeroed at hb == 0)
                pl.BlockSpec((bn, 8, W),
                             lambda n, h: (n, jnp.maximum(h * ht8 - 1, 0), 0)),
                # 8-row block starting just below the tile (clamped; zeroed at last hb)
                pl.BlockSpec((bn, 8, W),
                             lambda n, h: (n, jnp.minimum((h + 1) * ht8, nh8 - 1), 0)),
            ],
            out_specs=pl.BlockSpec((bn, h_tile, W), lambda n, h: (n, h, 0)),
            compiler_params=pltpu.CompilerParams(
                dimension_semantics=("parallel", "parallel"),
                vmem_limit_bytes=vmem_limit,
            ),
        )(x3, x3, x3)

    # TODO(synk): for W not a multiple of 128 the output stores are lane-masked;
    # a lane-dense relayout would require a different shift scheme and is left out.
    return out3.reshape(N, 1, H, W)


if __name__ == "__main__":
    key = jax.random.PRNGKey(0)

    def reference(x):
        wx = jnp.array([[-1., 0., 1.], [-2., 0., 2.], [-1., 0., 1.]], jnp.float32)
        wy = jnp.array([[1., 2., 1.], [0., 0., 0.], [-1., -2., -1.]], jnp.float32)
        dn = ("NCHW", "OIHW", "NCHW")
        xf = x.astype(jnp.float32)
        sx = lax.conv_general_dilated(xf, wx[None, None], (1, 1), ((1, 1), (1, 1)),
                                      dimension_numbers=dn)
        sy = lax.conv_general_dilated(xf, wy[None, None], (1, 1), ((1, 1), (1, 1)),
                                      dimension_numbers=dn)
        return (jnp.abs(sx) + jnp.abs(sy)).astype(x.dtype)

    # 1) Module-sized input (N=2, C=1, 16x16) -> whole-image blocks, 2 grid steps.
    x = jax.random.normal(key, (2, 1, 16, 16), dtype=jnp.float32)
    out = jax.block_until_ready(sobelxy(x))
    ref = reference(x)
    assert out.shape == ref.shape and out.dtype == ref.dtype
    err = float(jnp.max(jnp.abs(out - ref)))
    assert err < 1e-4, f"whole-image path: max abs err = {err}"

    # 2) Force the H-tiled path (ragged last tile, lane-dense W) and verify it.
    x2 = jax.random.normal(jax.random.fold_in(key, 1), (1, 1, 88, 128),
                           dtype=jnp.float32)
    out2 = jax.block_until_ready(sobelxy(x2, h_tile=32))
    ref2 = reference(x2)
    assert out2.shape == ref2.shape and out2.dtype == ref2.dtype
    err2 = float(jnp.max(jnp.abs(out2 - ref2)))
    assert err2 < 1e-4, f"H-tiled path: max abs err = {err2}"

    print("KERNEL_OK")
</pallas_src>

<mosaic_0001>
module attributes {stable_mosaic.version = 11 : i64} {
  func.func @_sobelxy_kernel_full(%arg0: i32, %arg1: memref<1x16x16xf32, #tpu.memory_space<vmem>>, %arg2: memref<1x16x16xf32, #tpu.memory_space<vmem>>) attributes {dimension_semantics = [#tpu.dimension_semantics<parallel>], iteration_bounds = array<i64: 2>, scalar_prefetch = 0 : i64, scratch_operands = 0 : i64, tpu.core_type = #tpu.core_type<tc>, window_params = [{transform_indices = @transform_0, window_bounds = array<i64: 1, 16, 16>}, {transform_indices = @transform_1, window_bounds = array<i64: 1, 16, 16>}]} {
    %c0 = arith.constant 0 : index
    %c0_0 = arith.constant 0 : index
    %c0_1 = arith.constant 0 : index
    %0 = vector.load %arg1[%c0, %c0_0, %c0_1] : memref<1x16x16xf32, #tpu.memory_space<vmem>>, vector<1x16x16xf32>
    %1 = tpu.iota {dimensions = array<i32: 2>} : vector<1x16x16xi32>
    %c0_i32 = arith.constant 0 : i32
    %2 = vector.broadcast %c0_i32 : i32 to vector<1x16x16xi32>
    %3 = arith.cmpi eq, %1, %2 : vector<1x16x16xi32>
    %c15_i32 = arith.constant 15 : i32
    %4 = vector.broadcast %c15_i32 : i32 to vector<1x16x16xi32>
    %5 = arith.cmpi eq, %1, %4 : vector<1x16x16xi32>
    %cst = arith.constant 0.000000e+00 : f32
    %6 = vector.broadcast %cst : f32 to vector<1x16x16xf32>
    %c1_i32 = arith.constant 1 : i32
    %7 = tpu.dynamic_rotate %0 by %c1_i32 dim 2 : vector<1x16x16xf32>, i32 -> vector<1x16x16xf32>
    %8 = arith.select %3, %6, %7 : vector<1x16x16xi1>, vector<1x16x16xf32>
    %c15_i32_2 = arith.constant 15 : i32
    %9 = tpu.dynamic_rotate %0 by %c15_i32_2 dim 2 : vector<1x16x16xf32>, i32 -> vector<1x16x16xf32>
    %10 = arith.select %5, %6, %9 : vector<1x16x16xi1>, vector<1x16x16xf32>
    %11 = arith.subf %10, %8 : vector<1x16x16xf32>
    %12 = arith.addf %8, %10 : vector<1x16x16xf32>
    %13 = arith.addf %0, %0 : vector<1x16x16xf32>
    %14 = arith.addf %12, %13 : vector<1x16x16xf32>
    %15 = tpu.iota {dimensions = array<i32: 1>} : vector<1x16x16xi32>
    %c0_i32_3 = arith.constant 0 : i32
    %16 = vector.broadcast %c0_i32_3 : i32 to vector<1x16x16xi32>
    %17 = arith.cmpi eq, %15, %16 : vector<1x16x16xi32>
    %c15_i32_4 = arith.constant 15 : i32
    %18 = vector.broadcast %c15_i32_4 : i32 to vector<1x16x16xi32>
    %19 = arith.cmpi eq, %15, %18 : vector<1x16x16xi32>
    %cst_5 = arith.constant 0.000000e+00 : f32
    %20 = vector.broadcast %cst_5 : f32 to vector<1x16x16xf32>
    %c1_i32_6 = arith.constant 1 : i32
    %21 = tpu.dynamic_rotate %11 by %c1_i32_6 dim 1 : vector<1x16x16xf32>, i32 -> vector<1x16x16xf32>
    %22 = arith.select %17, %20, %21 : vector<1x16x16xi1>, vector<1x16x16xf32>
    %23 = arith.addf %11, %11 : vector<1x16x16xf32>
    %24 = arith.addf %22, %23 : vector<1x16x16xf32>
    %cst_7 = arith.constant 0.000000e+00 : f32
    %25 = vector.broadcast %cst_7 : f32 to vector<1x16x16xf32>
    %c15_i32_8 = arith.constant 15 : i32
    %26 = tpu.dynamic_rotate %11 by %c15_i32_8 dim 1 : vector<1x16x16xf32>, i32 -> vector<1x16x16xf32>
    %27 = arith.select %19, %25, %26 : vector<1x16x16xi1>, vector<1x16x16xf32>
    %28 = arith.addf %24, %27 : vector<1x16x16xf32>
    %29 = math.absf %28 : vector<1x16x16xf32>
    %cst_9 = arith.constant 0.000000e+00 : f32
    %30 = vector.broadcast %cst_9 : f32 to vector<1x16x16xf32>
    %c1_i32_10 = arith.constant 1 : i32
    %31 = tpu.dynamic_rotate %14 by %c1_i32_10 dim 1 : vector<1x16x16xf32>, i32 -> vector<1x16x16xf32>
    %32 = arith.select %17, %30, %31 : vector<1x16x16xi1>, vector<1x16x16xf32>
    %cst_11 = arith.constant 0.000000e+00 : f32
    %33 = vector.broadcast %cst_11 : f32 to vector<1x16x16xf32>
    %c15_i32_12 = arith.constant 15 : i32
    %34 = tpu.dynamic_rotate %14 by %c15_i32_12 dim 1 : vector<1x16x16xf32>, i32 -> vector<1x16x16xf32>
    %35 = arith.select %19, %33, %34 : vector<1x16x16xi1>, vector<1x16x16xf32>
    %36 = arith.subf %32, %35 : vector<1x16x16xf32>
    %37 = math.absf %36 : vector<1x16x16xf32>
    %38 = arith.addf %29, %37 : vector<1x16x16xf32>
    %c0_13 = arith.constant 0 : index
    %c0_14 = arith.constant 0 : index
    %c0_15 = arith.constant 0 : index
    %39 = vector.load %arg2[%c0_13, %c0_14, %c0_15] : memref<1x16x16xf32, #tpu.memory_space<vmem>>, vector<1x16x16xf32>
    tpu.vector_store %arg2[%c0_13, %c0_14, %c0_15], %38 {strides = array<i32>} : memref<1x16x16xf32, #tpu.memory_space<vmem>>, vector<1x16x16xf32>,
    return
  }
  func.func @transform_0(%arg0: i32) -> (i32, i32, i32) {
    %c0_i32 = arith.constant 0 : i32
    %c0_i32_0 = arith.constant 0 : i32
    %c0_i32_1 = arith.constant 0 : i32
    return %arg0, %c0_i32, %c0_i32_0 : i32, i32, i32
  }
  func.func @transform_1(%arg0: i32) -> (i32, i32, i32) {
    %c0_i32 = arith.constant 0 : i32
    %c0_i32_0 = arith.constant 0 : i32
    %c0_i32_1 = arith.constant 0 : i32
    return %arg0, %c0_i32, %c0_i32_0 : i32, i32, i32
  }
}

</mosaic_0001>

<llo_original>
// kernel: sobelxy.1
$region0: #{sobelxy.1}
  #allocation0 [shape = 'u32[]', space=smem, size = 0x4, offset = 0x4, fixed_abs, tag = 'smem constant byte address 0x4 - core index']
  #allocation1 [shape = 'u32[144,128]{1,0:T(1,128)}', space=vmem, size = 0x12000, scoped, tag = 'internal scratch']
  %s0 = inlined_call_operand.hbm [shape: f32[2,16,16], index: 0, kind: input, shape index: {}]
  %s1 = inlined_call_operand.hbm [shape: f32[2,16,16], index: 1, kind: output, shape index: {}]
  %s2 = sld [smem:[#allocation0]]
  $region41: #{sobelxy.1} parent=0
    _
  %s4 = ssub.s32 1, %s2
  %s5 = scalar_select 0, %s4, %s2
  $region1: #{sobelxy.1} parent=0
    #allocation2 [shape = 'u8[16384]{0}', space=vmem, size = 0x4000, scoped, tag = 'input window, operand 0']
    #allocation3 [shape = 's32[2]{0}', space=sflag, size = 0x8, scoped, tag = 'scoped memory for sobelxy.1']
    #allocation4 [shape = 's32[2]{0}', space=sflag, size = 0x8, scoped, tag = 'scoped memory for sobelxy.1']
    #allocation5 [shape = 'u8[16384]{0}', space=vmem, size = 0x4000, scoped, tag = 'output window, operand 0']
    %6 = vsyncpa [#allocation3], 0
    %s7 = scalar_lea.sflag [#allocation3], 1
    %8 = vsyncpa %s7, 0
    %9 = vsyncpa [#allocation4], 0
    %s10 = scalar_lea.sflag [#allocation4], 1
    %11 = vsyncpa %s10, 0
    loop: start=0, step=1, limit=4
    $region2: #{sobelxy.1} parent=1 // loop_pre_header
      _
    $region3: #{sobelxy.1} parent=1 // loop_header
      %s13 = sphi 0, %s17
      %p14 = scmp.ge.s32.totalorder %s13, 4
      %s23 = sphi 0, %s25
      %s26 = sphi 0, %s23
      %s27 = sphi 0, %s26
      %s43 = sphi 0, %s27
      %s49 = sphi 0, %s51
      %s52 = sphi 0, %s49
      %s53 = sphi 0, %s52
      %s69 = sphi 0, %s53
    $region4: #{sobelxy.1} parent=1 // loop_header_branch
      %16 = sbr.rel (%p14) target = $region8
    $region5: #{sobelxy.1} parent=1 // loop_body
      %s18 = ssub.s32 %s13, 1
      %s19 = ssub.s32 %s13, 2
      %s20 = sadd.s32 %s13, 1
      %s21 = ssub.s32 %s13, %s20
      %p22 = scmp.eq.s32.totalorder %s21, 0
      %s24 = sadd.s32 %s23, 1
      %s25 = scalar_select %p22, %s23, %s24
      %p28 = pneg %p22
      %p29 = scmp.eq.s32.totalorder %s13, 1
      %p30 = por %p28, %p29
      %p31 = scmp.ne.s32.totalorder %s23, %s26
      %p32 = scmp.eq.s32.totalorder %s13, 0
      %p33 = por %p31, %p32
      %p34 = scmp.ne.s32.totalorder %s23, %s26
      %p35 = scmp.eq.s32.totalorder %s18, 1
      %p36 = por %p34, %p35
      %p37 = scmp.ne.s32.totalorder %s26, %s27
      %p38 = scmp.eq.s32.totalorder %s18, 0
      %p39 = por %p37, %p38
      %p40 = scmp.ne.s32.totalorder %s26, %s27
      %p41 = scmp.eq.s32.totalorder %s19, 1
      %p42 = por %p40, %p41
      %p44 = scmp.ne.s32.totalorder %s27, %s43
      %p45 = scmp.eq.s32.totalorder %s19, 0
      %p46 = por %p44, %p45
      %s47 = ssub.s32 %s13, %s20
      %p48 = scmp.eq.s32.totalorder %s47, 0
      %s50 = sadd.s32 %s49, 1
      %s51 = scalar_select %p48, %s49, %s50
      %p54 = pneg %p48
      %p55 = scmp.eq.s32.totalorder %s13, 1
      %p56 = por %p54, %p55
      %p57 = scmp.ne.s32.totalorder %s49, %s52
      %p58 = scmp.eq.s32.totalorder %s13, 0
      %p59 = por %p57, %p58
      %p60 = scmp.ne.s32.totalorder %s49, %s52
      %p61 = scmp.eq.s32.totalorder %s18, 1
      %p62 = por %p60, %p61
      %p63 = scmp.ne.s32.totalorder %s52, %s53
      %p64 = scmp.eq.s32.totalorder %s18, 0
      %p65 = por %p63, %p64
      %p66 = scmp.ne.s32.totalorder %s52, %s53
      %p67 = scmp.eq.s32.totalorder %s19, 1
      %p68 = por %p66, %p67
      %p70 = scmp.ne.s32.totalorder %s53, %s69
      %p71 = scmp.eq.s32.totalorder %s19, 0
      %p72 = por %p70, %p71
      %p73 = scmp.le.s32.totalorder 1, %s13
      %p74 = scmp.lt.s32.totalorder %s13, 3
      %p75 = pnand %p73, %p74
      %p76 = pneg %p75
      // Predicated region
      $region9: #{sobelxy.1} parent=5 // pred_check
        _
      $region10: #{sobelxy.1} parent=5 // pred_check_branch
        %78 = sbr.rel (%p75) target = $region12
      $region11: #{sobelxy.1} parent=5 // pred_region
        %s79 = ssub.s32 %s13, 1
      $region12: #{sobelxy.1} parent=5 // pred_fallthru
        _
      %p80 = scmp.lt.s32.totalorder %s13, 2
      // Predicated region
      $region13: #{sobelxy.1} parent=5 // pred_check
        %p81 = pneg %p80
      $region14: #{sobelxy.1} parent=5 // pred_check_branch
        %83 = sbr.rel (%p81) target = $region16
      $region15: #{sobelxy.1} parent=5 // pred_region
        // Predicated region
        $region17: #{sobelxy.1} parent=15 // pred_check
          %p84 = pneg %p33
        $region18: #{sobelxy.1} parent=15 // pred_check_branch
          %86 = sbr.rel (%p84) target = $region20
        $region19: #{sobelxy.1} parent=15 // pred_region
          %s87 = sand.u32 %s23, 1
          %s88 = scalar_lea.sflag [#allocation3], %s87
          %s89 = sand.u32 %s23, 1
          %s90 = smul.addr %s89, 16
          %s91 = scalar_lea.vmem [#allocation2], %s90
          %s93 = ssub.s32 256, 256
          %94 = vsyncadd %s88, %s93
          %s95 = smul.addr %s13, 2
          %s96 = smul.addr %s95, 128
          %s97 = scalar_lea.hbm %s0, %s96
          %s98 = sshll.u32 %s91, 4
          %s99 = int_to_ptr.vmem [resolvable:$true] %s98
          %104 = dma.hbm_to_vmem [thread:$0]  %s97, 256, %s99, %s88, 128, 128, 8
        $region20: #{sobelxy.1} parent=15 // pred_fallthru
          _
      $region16: #{sobelxy.1} parent=5 // pred_fallthru
        _
      %p105 = scmp.le.s32.totalorder 1, %s13
      %p106 = scmp.lt.s32.totalorder %s13, 3
      %p107 = pnand %p105, %p106
      %p108 = pneg %p107
      // Predicated region
      $region21: #{sobelxy.1} parent=5 // pred_check
        _
      $region22: #{sobelxy.1} parent=5 // pred_check_branch
        %110 = sbr.rel (%p107) target = $region24
      $region23: #{sobelxy.1} parent=5 // pred_region
        %s111 = ssub.s32 %s13, 1
        %s112 = sand.u32 %s26, 1
        %s113 = scalar_lea.sflag [#allocation3], %s112
        %s114 = sand.u32 %s26, 1
        %s115 = smul.addr %s114, 16
        %s116 = scalar_lea.vmem [#allocation2], %s115
        // Predicated region
        $region25: #{sobelxy.1} parent=23 // pred_check
          %p117 = pneg %p39
        $region26: #{sobelxy.1} parent=23 // pred_check_branch
          %119 = sbr.rel (%p117) target = $region28
        $region27: #{sobelxy.1} parent=23 // pred_region
          %120 = dma.done %s113, 256
        $region28: #{sobelxy.1} parent=23 // pred_fallthru
          _
        %s121 = sand.u32 %s26, 1
        %s122 = scalar_lea.sflag [#allocation3], %s121
        %s123 = sand.u32 %s26, 1
        %s124 = smul.addr %s123, 16
        %s125 = scalar_lea.vmem [#allocation2], %s124
        %p126 = pneg %p39
        %p127 = pneg %p36
        %p128 = pneg %p65
        %p129 = pneg %p62
        %s130 = sand.u32 %s52, 1
        %s131 = scalar_lea.sflag [#allocation4], %s130
        %s132 = sand.u32 %s52, 1
        %s133 = smul.addr %s132, 16
        %s134 = scalar_lea.vmem [#allocation5], %s133
        %v135 = vld [vmem:[%s116] sm:$0xff]
        %v136 = vld [vmem:[%s116 + $0x8] sm:$0xff]
        %v137 = vlaneseq
        %v138 = vand.u32 %v137, 127
        %vm139 = vcmp.eq.s32.totalorder %v138, 0
        %vm140 = vcmp.eq.s32.totalorder %v138, 15
        %vm141 = vcmask 1047680
        %142 = vrot.lane.b32.xlu0 %v135, 16
        %v143 = vpop.permute.xlu0 %142
        %v144 = vsel %vm141, %v143, %v135
        %145 = vrot.lane.b32.xlu0 %v136, 16
        %v146 = vpop.permute.xlu0 %145
        %v147 = vsel %vm141, %v146, %v136
        %148 = vrot.lane.b32.xlu0 %v144, 16
        %v149 = vpop.permute.xlu0 %148
        %150 = vrot.lane.b32.xlu0 %v147, 16
        %v151 = vpop.permute.xlu0 %150
        %v152 = vsel %vm141, %v149, %v135
        %v153 = vsel %vm141, %v151, %v136
        %156 = vrot.lane.b32.xlu0 %v152, 113
        %v157 = vpop.permute.xlu0 %156
        %158 = vrot.lane.b32.xlu0 %v153, 113
        %v159 = vpop.permute.xlu0 %158
        %v162 = vsel %vm139, 0.0, %v157
        %v163 = vsel %vm139, 0.0, %v159
        %164 = vrot.lane.b32.xlu0 %v152, 127
        %v165 = vpop.permute.xlu0 %164
        %166 = vrot.lane.b32.xlu0 %v153, 127
        %v167 = vpop.permute.xlu0 %166
        %v170 = vsel %vm140, 0.0, %v165
        %v171 = vsel %vm140, 0.0, %v167
        %v172 = vsub.f32 %v170, %v162
        %v173 = vsub.f32 %v171, %v163
        %v174 = vadd.f32 %v162, %v170
        %v175 = vadd.f32 %v163, %v171
        %v176 = vadd.f32 %v135, %v135
        %v177 = vadd.f32 %v136, %v136
        %v178 = vadd.f32 %v174, %v176
        %v179 = vadd.f32 %v175, %v177
        %v180 = vlaneseq
        %v181 = vshrl.u32 %v180, 7
        %v182 = vadd.s32 %v181, 8
        %vm183 = vcmp.eq.s32.totalorder %v181, 0
        %vm184 = vcmp.eq.s32.totalorder %v182, 0
        %vm185 = vcmp.eq.s32.totalorder %v181, 15
        %vm186 = vcmp.eq.s32.totalorder %v182, 15
        %v187 = vrot.slane %v172, 7
        %v188 = vrot.slane %v173, 7
        %vm189 = vcmp.lt.s32.totalorder %v181, 1
        %v190 = vsel %vm189, %v187, %v188
        %v191 = vsel %vm189, %v188, %v187
        %v192 = vsel %vm183, 0.0, %v191
        %v193 = vsel %vm184, 0.0, %v190
        %v194 = vadd.f32 %v172, %v172
        %v195 = vadd.f32 %v173, %v173
        %v196 = vadd.f32 %v192, %v194
        %v197 = vadd.f32 %v193, %v195
        %v198 = vrot.slane %v172, 1
        %v199 = vrot.slane %v173, 1
        %vm200 = vcmp.lt.s32.totalorder %v181, 7
        %v201 = vsel %vm200, %v198, %v199
        %v202 = vsel %vm200, %v199, %v198
        %v203 = vsel %vm185, 0.0, %v201
        %v204 = vsel %vm186, 0.0, %v202
        %v205 = vadd.f32 %v196, %v203
        %v206 = vadd.f32 %v197, %v204
        %v207 = vand.u32 2147483647, %v205
        %v208 = vand.u32 2147483647, %v206
        %v209 = vrot.slane %v178, 7
        %v210 = vrot.slane %v179, 7
        %v211 = vsel %vm189, %v209, %v210
        %v212 = vsel %vm189, %v210, %v209
        %v213 = vsel %vm183, 0.0, %v212
        %v214 = vsel %vm184, 0.0, %v211
        %v215 = vrot.slane %v178, 1
        %v216 = vrot.slane %v179, 1
        %v217 = vsel %vm200, %v215, %v216
        %v218 = vsel %vm200, %v216, %v215
        %v219 = vsel %vm185, 0.0, %v217
        %v220 = vsel %vm186, 0.0, %v218
        %v221 = vsub.f32 %v213, %v219
        %v222 = vsub.f32 %v214, %v220
        %v223 = vand.u32 2147483647, %v221
        %v224 = vand.u32 2147483647, %v222
        %v225 = vadd.f32 %v207, %v223
        %v226 = vadd.f32 %v208, %v224
        %vm227 = vcmask 130048
        %228 = vst.msk [vmem:[%s134] sm:$0xff] %vm227, %v225
        %229 = vst.msk [vmem:[%s134 + $0x8] sm:$0xff] %vm227, %v226
        %s230 = sand.u32 %s52, 1
        %s231 = scalar_lea.sflag [#allocation4], %s230
        %s232 = sand.u32 %s52, 1
        %s233 = smul.addr %s232, 16
        %s234 = scalar_lea.vmem [#allocation5], %s233
        // Predicated region
        $region29: #{sobelxy.1} parent=23 // pred_check
          %p235 = pneg %p62
        $region30: #{sobelxy.1} parent=23 // pred_check_branch
          %237 = sbr.rel (%p235) target = $region32
        $region31: #{sobelxy.1} parent=23 // pred_region
          %s239 = ssub.s32 256, 256
          %240 = vsyncadd %s231, %s239
          %s241 = smul.addr %s18, 2
          %s242 = smul.addr %s241, 128
          %s243 = scalar_lea.hbm %s1, %s242
          %s244 = sshll.u32 %s234, 4
          %s245 = int_to_ptr.vmem [resolvable:$true] %s244
          %250 = dma.vmem_to_hbm [thread:$0]  %s245, 256, %s243, %s231, 128, 128, 8
        $region32: #{sobelxy.1} parent=23 // pred_fallthru
          _
      $region24: #{sobelxy.1} parent=5 // pred_fallthru
        _
      %p251 = scmp.le.s32.totalorder 2, %s13
      // Predicated region
      $region33: #{sobelxy.1} parent=5 // pred_check
        %p252 = pneg %p251
      $region34: #{sobelxy.1} parent=5 // pred_check_branch
        %254 = sbr.rel (%p252) target = $region36
      $region35: #{sobelxy.1} parent=5 // pred_region
        %s255 = ssub.s32 %s13, 2
        // Predicated region
        $region37: #{sobelxy.1} parent=35 // pred_check
          %p256 = pneg %p68
        $region38: #{sobelxy.1} parent=35 // pred_check_branch
          %258 = sbr.rel (%p256) target = $region40
        $region39: #{sobelxy.1} parent=35 // pred_region
          %s259 = sand.u32 %s53, 1
          %s260 = scalar_lea.sflag [#allocation4], %s259
          %s261 = sand.u32 %s53, 1
          %s262 = smul.addr %s261, 16
          %s263 = scalar_lea.vmem [#allocation5], %s262
          %264 = dma.done %s260, 256
        $region40: #{sobelxy.1} parent=35 // pred_fallthru
          _
      $region36: #{sobelxy.1} parent=5 // pred_fallthru
        _
    $region6: #{sobelxy.1} parent=1 // loop_footer
      %s17 = sadd.s32 1, %s13
    $region7: #{sobelxy.1} parent=1 // loop_footer_branch
      %12 = sbr.rel target = $region3
    $region8: #{sobelxy.1} parent=1 // loop_exit
      _
    %265 = vsyncpa [#allocation3], 1
    %s266 = scalar_lea.sflag [#allocation3], 1
    %267 = vsyncpa %s266, 1
    %268 = vsyncpa [#allocation4], 1
    %s269 = scalar_lea.sflag [#allocation4], 1
    %270 = vsyncpa %s269, 1

</llo_original>
